<compile_context>
chip_gen: v7x
topology: tpu7x:2x2x1
jax: 0.10.0
libtpu: 0.0.40
codegen_flags: <defaults>
</compile_context>

<pallas_src>
import functools

import numpy as np
import jax
import jax.numpy as jnp
from jax import lax
from jax.experimental import pallas as pl
from jax.experimental.pallas import tpu as pltpu


def _round_up(x, m):
    return ((x + m - 1) // m) * m


def _fused_embedding_kernel(x_ref, proj_ref, o_ref, act_ref, *,
                            inp_dim, k_total, k_pad, cat_specs, compute_dtype):
    """One batch tile.

    x_ref:    (TB, inp_dim)   int32          raw feature tile (pipelined)
    proj_ref: (k_pad, n_pad)  compute_dtype  fused projection matrix (resident)
    o_ref:    (TB, n_pad)     float32        output tile (lane-dense, padded N)
    act_ref:  (TB, k_pad)     compute_dtype  VMEM scratch for the activation
    cat_specs: tuple of (col_idx, lane_offset, n_cat) per categorical column.
    """
    x = x_ref[...]                                    # (TB, inp_dim) int32
    tb = x.shape[0]

    # Continuous pass-through region: lanes [0, inp_dim) get the raw values.
    # (proj rows of categorical columns inside this region are zero, so the
    #  raw class ids written here contribute nothing to the output.)
    act_ref[:, :inp_dim] = x.astype(compute_dtype)

    # One-hot slabs, one per categorical column: O(TB * n_cat_j) compare work
    # each, written through a static lane slice -- no (TB, k_pad) int32
    # temporaries.  Compares stay in int32 (v5e has no bf16 VPU path); a single
    # cast happens at the store into the compute_dtype scratch.
    for col_idx, lane_off, n_cat in cat_specs:
        iota = lax.broadcasted_iota(jnp.int32, (tb, n_cat), 1)
        onehot = iota == x[:, col_idx:col_idx + 1]
        act_ref[:, lane_off:lane_off + n_cat] = onehot.astype(compute_dtype)

    # Zero the (< 128-lane) K padding tail.  Redone every grid step so the
    # kernel stays correct even when the batch grid is sharded across
    # TensorCores (v7x) and a core never sees grid step 0.
    if k_pad > k_total:
        act_ref[:, k_total:] = jnp.zeros((tb, k_pad - k_total), compute_dtype)

    # Single MXU pass; result lands directly in torch.cat(col, dim=1) column
    # order (plus zero padding columns that the wrapper slices off).
    o_ref[...] = jnp.dot(act_ref[...], proj_ref[...],
                         preferred_element_type=jnp.float32).astype(o_ref.dtype)


def embedding_creator_forward(x, tables, cat_col_idx, *, batch_tile=256,
                              compute_dtype=jnp.float32):
    """Pallas equivalent of Embedding_Creator.forward.

    x:       (B, inp_dim) int feature matrix (categorical cols hold class ids)
    tables:  list of (cat_col_dim[j], cat_emb_dim[j]) float32 embedding tables,
             consumed in ascending column order (matches the nn.Module forward).

    compute_dtype=jnp.bfloat16 targets the v6e/v7x bf16 MXU and halves the
    resident proj / act scratch, but continuous features then pass through the
    matmul with ~8 mantissa bits (values > 256 or needing full f32 precision
    diverge from torch's `.float()` pass-through).  Default f32 is bit-exact.
    Out-of-range categorical ids produce an all-zero embedding row instead of
    raising like torch nn.Embedding.
    """
    x = x.astype(jnp.int32)
    B, inp_dim = x.shape
    cat_set = set(int(i) for i in cat_col_idx)
    assert len(tables) == len(cat_set)

    tables_np = [np.asarray(t, dtype=np.float32) for t in tables]
    cat_emb_dim = [int(t.shape[1]) for t in tables_np]
    post_emb_size = inp_dim - len(cat_set) + int(np.sum(cat_emb_dim))

    # Fused K dimension (raw-value lanes + one-hot lanes), padded to 128;
    # output width padded to a lane-dense multiple of 128.
    k_total = inp_dim + sum(int(t.shape[0]) for t in tables_np)
    k_pad = _round_up(max(k_total, 1), 128)
    n_pad = _round_up(max(post_emb_size, 1), 128)
    itemsize = jnp.dtype(compute_dtype).itemsize

    # ---- build the fused projection matrix on the host (numpy; no per-column
    #      scatter HLOs at trace time) ----------------------------------------
    proj_np = np.zeros((k_pad, n_pad), dtype=np.float32)
    cat_specs = []
    out_col = 0
    lane_off = inp_dim
    t = 0
    for idx in range(inp_dim):
        if idx in cat_set:
            tbl = tables_np[t]
            n_cat, emb_dim = int(tbl.shape[0]), int(tbl.shape[1])
            proj_np[lane_off:lane_off + n_cat, out_col:out_col + emb_dim] = tbl
            cat_specs.append((idx, lane_off, n_cat))
            lane_off += n_cat
            out_col += emb_dim
            t += 1
        else:
            proj_np[idx, out_col] = 1.0
            out_col += 1
    proj = jnp.asarray(proj_np, dtype=compute_dtype)

    # ---- batch tiling, sized for the smallest (v7x, 64 MiB) VMEM ------------
    sub = 16 if compute_dtype == jnp.bfloat16 else 8   # sublane tile per dtype
    # Prefer >= 2 batch tiles so dimension_semantics=("parallel",) can actually
    # shard the grid across v7x's two TensorCores (harmless on v5e/v6e).
    tb = min(_round_up(batch_tile, sub), _round_up(max(-(-B // 2), 1), sub))
    tb = max(tb, sub)

    def vmem_bytes(tb_):
        return (k_pad * n_pad * itemsize            # proj (single buffer)
                + tb_ * k_pad * itemsize            # act scratch
                + 2 * tb_ * inp_dim * 4             # double-buffered x tiles
                + 2 * tb_ * n_pad * 4)              # double-buffered out tiles

    budget = 40 << 20                               # headroom under v7x 64 MiB
    while tb > sub and vmem_bytes(tb) > budget:
        tb = max(_round_up(tb // 2, sub), sub)
    # Explicit scoped-VMEM limit (v5e's 16 MiB default is easily exceeded).
    vmem_limit = int(min(max(2 * vmem_bytes(tb), 32 << 20), 60 << 20))

    b_pad = _round_up(B, tb)
    # id 0 is valid for every categorical column, so zero-padding rows is safe.
    x_p = x if b_pad == B else jnp.pad(x, ((0, b_pad - B), (0, 0)))
    grid = (b_pad // tb,)

    kernel = functools.partial(
        _fused_embedding_kernel, inp_dim=inp_dim, k_total=k_total, k_pad=k_pad,
        cat_specs=tuple(cat_specs), compute_dtype=compute_dtype)

    cost = pl.CostEstimate(
        flops=2 * b_pad * k_pad * n_pad,
        transcendentals=0,
        bytes_accessed=int(x_p.size * 4 + int(proj.size) * itemsize
                           + b_pad * n_pad * 4))

    def _call(single_buffer_proj):
        if single_buffer_proj:
            # proj never changes across grid steps -> single-buffer it to halve
            # its VMEM footprint (matters most on v7x's 64 MiB).
            proj_spec = pl.BlockSpec((k_pad, n_pad), lambda i: (0, 0),
                                     pipeline_mode=pl.Buffered(1))
        else:
            proj_spec = pl.BlockSpec((k_pad, n_pad), lambda i: (0, 0))
        return pl.pallas_call(
            kernel,
            out_shape=jax.ShapeDtypeStruct((b_pad, n_pad), jnp.float32),
            grid=grid,
            in_specs=[
                pl.BlockSpec((tb, inp_dim), lambda i: (i, 0)),   # pipelined x
                proj_spec,                                       # resident proj
            ],
            out_specs=pl.BlockSpec((tb, n_pad), lambda i: (i, 0)),
            scratch_shapes=[pltpu.VMEM((tb, k_pad), compute_dtype)],
            compiler_params=pltpu.CompilerParams(
                dimension_semantics=("parallel",),
                vmem_limit_bytes=vmem_limit),
            cost_estimate=cost,
        )(x_p, proj)

    try:
        out = _call(True)
    except Exception:
        # Fallback if pipeline_mode=pl.Buffered(1) is not supported by this
        # jax version: default double-buffering (constant index_map still
        # avoids re-DMA of proj).
        out = _call(False)

    return out[:B, :post_emb_size]


if __name__ == "__main__":
    # Module config (small, deterministic)
    inp_dim = 6
    cat_col_idx = [1, 4]
    cat_col_dim = [5, 7]
    cat_emb_dim = [3, 4]
    B = 8

    key = jax.random.PRNGKey(0)
    k_tables, k_x_cont, k_x_cat = jax.random.split(key, 3)

    # nn.Embedding default init ~ N(0, 1), built deterministically in-script.
    table_keys = jax.random.split(k_tables, len(cat_col_dim))
    tables = [
        jax.random.normal(tk, (n, d), dtype=jnp.float32)
        for tk, (n, d) in zip(table_keys, zip(cat_col_dim, cat_emb_dim))
    ]

    # Integer feature matrix: continuous cols hold small ints (cast to float in
    # the kernel, mirroring x[:, idx].float()), categorical cols hold class ids.
    x = jax.random.randint(k_x_cont, (B, inp_dim), 0, 10, dtype=jnp.int32)
    for j, (idx, n) in enumerate(zip(cat_col_idx, cat_col_dim)):
        kcol = jax.random.fold_in(k_x_cat, j)
        x = x.at[:, idx].set(jax.random.randint(kcol, (B,), 0, n, dtype=jnp.int32))

    # Pure-JAX reference (matches the PyTorch forward semantics).
    cols = []
    t = 0
    for idx in range(inp_dim):
        if idx in cat_col_idx:
            cols.append(tables[t][x[:, idx]])
            t += 1
        else:
            cols.append(x[:, idx:idx + 1].astype(jnp.float32))
    ref = jnp.concatenate(cols, axis=1)

    # f32 compute path: bit-parity with the reference.
    out = jax.block_until_ready(embedding_creator_forward(x, tables, cat_col_idx))
    expected_cols = inp_dim - len(cat_col_idx) + int(np.sum(cat_emb_dim))
    assert out.shape == (B, expected_cols), out.shape
    np.testing.assert_allclose(np.asarray(out), np.asarray(ref), rtol=1e-6, atol=1e-6)

    # bf16 compute path (v6e/v7x MXU-friendly); looser tolerance (~8 mantissa bits).
    out_bf16 = jax.block_until_ready(
        embedding_creator_forward(x, tables, cat_col_idx,
                                  compute_dtype=jnp.bfloat16))
    np.testing.assert_allclose(np.asarray(out_bf16), np.asarray(ref),
                               rtol=2e-2, atol=2e-2)

    print("KERNEL_OK")
</pallas_src>

<mosaic_0001>
module attributes {stable_mosaic.version = 11 : i64} {
  func.func @_fused_embedding_kernel(%arg0: i32, %arg1: memref<8x6xi32, #tpu.memory_space<vmem>>, %arg2: memref<128x128xf32, #tpu.memory_space<vmem>>, %arg3: memref<8x128xf32, #tpu.memory_space<vmem>>, %arg4: memref<8x128xf32, #tpu.memory_space<vmem>>) attributes {dimension_semantics = [#tpu.dimension_semantics<parallel>], iteration_bounds = array<i64: 1>, scalar_prefetch = 0 : i64, scratch_operands = 1 : i64, tpu.core_type = #tpu.core_type<tc>, window_params = [{transform_indices = @transform_0, window_bounds = array<i64: 8, 6>}, {pipeline_mode = #tpu.pipeline_mode<synchronous>, transform_indices = @transform_1, window_bounds = array<i64: 128, 128>}, {transform_indices = @transform_2, window_bounds = array<i64: 8, 128>}]} {
    %c0 = arith.constant 0 : index
    %c0_0 = arith.constant 0 : index
    %0 = vector.load %arg1[%c0, %c0_0] : memref<8x6xi32, #tpu.memory_space<vmem>>, vector<8x6xi32>
    %1 = arith.sitofp %0 : vector<8x6xi32> to vector<8x6xf32>
    %c0_1 = arith.constant 0 : index
    %c0_2 = arith.constant 0 : index
    %2 = vector.load %arg4[%c0_1, %c0_2] : memref<8x128xf32, #tpu.memory_space<vmem>>, vector<8x6xf32>
    tpu.vector_store %arg4[%c0_1, %c0_2], %1 {strides = array<i32>} : memref<8x128xf32, #tpu.memory_space<vmem>>, vector<8x6xf32>,
    %3 = tpu.iota {dimensions = array<i32: 1>} : vector<8x5xi32>
    %4 = vector.extract_strided_slice %0 {offsets = [0, 1], sizes = [8, 1], strides = [1, 1]} : vector<8x6xi32> to vector<8x1xi32>
    %5 = vector.broadcast %4 : vector<8x1xi32> to vector<8x5xi32>
    %6 = arith.cmpi eq, %3, %5 : vector<8x5xi32>
    %7 = arith.extui %6 : vector<8x5xi1> to vector<8x5xi32>
    %8 = arith.sitofp %7 : vector<8x5xi32> to vector<8x5xf32>
    %c0_3 = arith.constant 0 : index
    %c6 = arith.constant 6 : index
    %9 = vector.load %arg4[%c0_3, %c6] : memref<8x128xf32, #tpu.memory_space<vmem>>, vector<8x5xf32>
    tpu.vector_store %arg4[%c0_3, %c6], %8 {strides = array<i32>} : memref<8x128xf32, #tpu.memory_space<vmem>>, vector<8x5xf32>,
    %10 = tpu.iota {dimensions = array<i32: 1>} : vector<8x7xi32>
    %11 = vector.extract_strided_slice %0 {offsets = [0, 4], sizes = [8, 1], strides = [1, 1]} : vector<8x6xi32> to vector<8x1xi32>
    %12 = vector.broadcast %11 : vector<8x1xi32> to vector<8x7xi32>
    %13 = arith.cmpi eq, %10, %12 : vector<8x7xi32>
    %14 = arith.extui %13 : vector<8x7xi1> to vector<8x7xi32>
    %15 = arith.sitofp %14 : vector<8x7xi32> to vector<8x7xf32>
    %c0_4 = arith.constant 0 : index
    %c11 = arith.constant 11 : index
    %16 = vector.load %arg4[%c0_4, %c11] : memref<8x128xf32, #tpu.memory_space<vmem>>, vector<8x7xf32>
    tpu.vector_store %arg4[%c0_4, %c11], %15 {strides = array<i32>} : memref<8x128xf32, #tpu.memory_space<vmem>>, vector<8x7xf32>,
    %cst = arith.constant 0.000000e+00 : f32
    %17 = vector.broadcast %cst : f32 to vector<8x110xf32>
    %c0_5 = arith.constant 0 : index
    %c18 = arith.constant 18 : index
    %18 = vector.load %arg4[%c0_5, %c18] : memref<8x128xf32, #tpu.memory_space<vmem>>, vector<8x110xf32>
    tpu.vector_store %arg4[%c0_5, %c18], %17 {strides = array<i32>} : memref<8x128xf32, #tpu.memory_space<vmem>>, vector<8x110xf32>,
    %c0_6 = arith.constant 0 : index
    %c0_7 = arith.constant 0 : index
    %19 = vector.load %arg4[%c0_6, %c0_7] : memref<8x128xf32, #tpu.memory_space<vmem>>, vector<8x128xf32>
    %c0_8 = arith.constant 0 : index
    %c0_9 = arith.constant 0 : index
    %20 = vector.load %arg2[%c0_8, %c0_9] : memref<128x128xf32, #tpu.memory_space<vmem>>, vector<128x128xf32>
    %cst_10 = arith.constant dense<0.000000e+00> : vector<8x128xf32>
    %21 = tpu.matmul %19, %20, %cst_10 {dimension_numbers = #tpu.dot_dimension_numbers<[1], [0], [0], [1], [0, 0, 1, 1], [], []>} : vector<8x128xf32>, vector<128x128xf32>, vector<8x128xf32> -> vector<8x128xf32>
    %c0_11 = arith.constant 0 : index
    %c0_12 = arith.constant 0 : index
    %22 = vector.load %arg3[%c0_11, %c0_12] : memref<8x128xf32, #tpu.memory_space<vmem>>, vector<8x128xf32>
    tpu.vector_store %arg3[%c0_11, %c0_12], %21 {strides = array<i32>} : memref<8x128xf32, #tpu.memory_space<vmem>>, vector<8x128xf32>,
    return
  }
  func.func @transform_0(%arg0: i32) -> (i32, i32) {
    %c0_i32 = arith.constant 0 : i32
    %c0_i32_0 = arith.constant 0 : i32
    return %arg0, %c0_i32 : i32, i32
  }
  func.func @transform_1(%arg0: i32) -> (i32, i32) {
    %c0_i32 = arith.constant 0 : i32
    %c0_i32_0 = arith.constant 0 : i32
    %c0_i32_1 = arith.constant 0 : i32
    return %c0_i32, %c0_i32_0 : i32, i32
  }
  func.func @transform_2(%arg0: i32) -> (i32, i32) {
    %c0_i32 = arith.constant 0 : i32
    %c0_i32_0 = arith.constant 0 : i32
    return %arg0, %c0_i32 : i32, i32
  }
}

module attributes {stable_mosaic.version = 11 : i64} {
  func.func @_fused_embedding_kernel(%arg0: i32, %arg1: memref<8x6xi32, #tpu.memory_space<vmem>>, %arg2: memref<128x128xf32, #tpu.memory_space<vmem>>, %arg3: memref<8x128xf32, #tpu.memory_space<vmem>>, %arg4: memref<8x128xf32, #tpu.memory_space<vmem>>) attributes {dimension_semantics = [#tpu.dimension_semantics<parallel>], iteration_bounds = array<i64: 1>, scalar_prefetch = 0 : i64, scratch_operands = 1 : i64, tpu.core_type = #tpu.core_type<tc>, window_params = [{transform_indices = @transform_0, window_bounds = array<i64: 8, 6>}, {pipeline_mode = #tpu.pipeline_mode<synchronous>, transform_indices = @transform_1, window_bounds = array<i64: 128, 128>}, {transform_indices = @transform_2, window_bounds = array<i64: 8, 128>}]} {
    %c0 = arith.constant 0 : index
    %c0_0 = arith.constant 0 : index
    %0 = vector.load %arg1[%c0, %c0_0] : memref<8x6xi32, #tpu.memory_space<vmem>>, vector<8x6xi32>
    %1 = arith.sitofp %0 : vector<8x6xi32> to vector<8x6xf32>
    %c0_1 = arith.constant 0 : index
    %c0_2 = arith.constant 0 : index
    %2 = vector.load %arg4[%c0_1, %c0_2] : memref<8x128xf32, #tpu.memory_space<vmem>>, vector<8x6xf32>
    tpu.vector_store %arg4[%c0_1, %c0_2], %1 {strides = array<i32>} : memref<8x128xf32, #tpu.memory_space<vmem>>, vector<8x6xf32>,
    %3 = tpu.iota {dimensions = array<i32: 1>} : vector<8x5xi32>
    %4 = vector.extract_strided_slice %0 {offsets = [0, 1], sizes = [8, 1], strides = [1, 1]} : vector<8x6xi32> to vector<8x1xi32>
    %5 = vector.broadcast %4 : vector<8x1xi32> to vector<8x5xi32>
    %6 = arith.cmpi eq, %3, %5 : vector<8x5xi32>
    %7 = arith.extui %6 : vector<8x5xi1> to vector<8x5xi32>
    %8 = arith.sitofp %7 : vector<8x5xi32> to vector<8x5xf32>
    %c0_3 = arith.constant 0 : index
    %c6 = arith.constant 6 : index
    %9 = vector.load %arg4[%c0_3, %c6] : memref<8x128xf32, #tpu.memory_space<vmem>>, vector<8x5xf32>
    tpu.vector_store %arg4[%c0_3, %c6], %8 {strides = array<i32>} : memref<8x128xf32, #tpu.memory_space<vmem>>, vector<8x5xf32>,
    %10 = tpu.iota {dimensions = array<i32: 1>} : vector<8x7xi32>
    %11 = vector.extract_strided_slice %0 {offsets = [0, 4], sizes = [8, 1], strides = [1, 1]} : vector<8x6xi32> to vector<8x1xi32>
    %12 = vector.broadcast %11 : vector<8x1xi32> to vector<8x7xi32>
    %13 = arith.cmpi eq, %10, %12 : vector<8x7xi32>
    %14 = arith.extui %13 : vector<8x7xi1> to vector<8x7xi32>
    %15 = arith.sitofp %14 : vector<8x7xi32> to vector<8x7xf32>
    %c0_4 = arith.constant 0 : index
    %c11 = arith.constant 11 : index
    %16 = vector.load %arg4[%c0_4, %c11] : memref<8x128xf32, #tpu.memory_space<vmem>>, vector<8x7xf32>
    tpu.vector_store %arg4[%c0_4, %c11], %15 {strides = array<i32>} : memref<8x128xf32, #tpu.memory_space<vmem>>, vector<8x7xf32>,
    %cst = arith.constant 0.000000e+00 : f32
    %17 = vector.broadcast %cst : f32 to vector<8x110xf32>
    %c0_5 = arith.constant 0 : index
    %c18 = arith.constant 18 : index
    %18 = vector.load %arg4[%c0_5, %c18] : memref<8x128xf32, #tpu.memory_space<vmem>>, vector<8x110xf32>
    tpu.vector_store %arg4[%c0_5, %c18], %17 {strides = array<i32>} : memref<8x128xf32, #tpu.memory_space<vmem>>, vector<8x110xf32>,
    %c0_6 = arith.constant 0 : index
    %c0_7 = arith.constant 0 : index
    %19 = vector.load %arg4[%c0_6, %c0_7] : memref<8x128xf32, #tpu.memory_space<vmem>>, vector<8x128xf32>
    %c0_8 = arith.constant 0 : index
    %c0_9 = arith.constant 0 : index
    %20 = vector.load %arg2[%c0_8, %c0_9] : memref<128x128xf32, #tpu.memory_space<vmem>>, vector<128x128xf32>
    %cst_10 = arith.constant dense<0.000000e+00> : vector<8x128xf32>
    %21 = tpu.matmul %19, %20, %cst_10 {dimension_numbers = #tpu.dot_dimension_numbers<[1], [0], [0], [1], [0, 0, 1, 1], [], []>} : vector<8x128xf32>, vector<128x128xf32>, vector<8x128xf32> -> vector<8x128xf32>
    %c0_11 = arith.constant 0 : index
    %c0_12 = arith.constant 0 : index
    %22 = vector.load %arg3[%c0_11, %c0_12] : memref<8x128xf32, #tpu.memory_space<vmem>>, vector<8x128xf32>
    tpu.vector_store %arg3[%c0_11, %c0_12], %21 {strides = array<i32>} : memref<8x128xf32, #tpu.memory_space<vmem>>, vector<8x128xf32>,
    return
  }
  func.func @transform_0(%arg0: i32) -> (i32, i32) {
    %c0_i32 = arith.constant 0 : i32
    %c0_i32_0 = arith.constant 0 : i32
    return %arg0, %c0_i32 : i32, i32
  }
  func.func @transform_1(%arg0: i32) -> (i32, i32) {
    %c0_i32 = arith.constant 0 : i32
    %c0_i32_0 = arith.constant 0 : i32
    %c0_i32_1 = arith.constant 0 : i32
    return %c0_i32, %c0_i32_0 : i32, i32
  }
  func.func @transform_2(%arg0: i32) -> (i32, i32) {
    %c0_i32 = arith.constant 0 : i32
    %c0_i32_0 = arith.constant 0 : i32
    return %arg0, %c0_i32 : i32, i32
  }
}

</mosaic_0001>

<llo_original>
// kernel: tpu_custom_call.1
$region0: #{tpu_custom_call.1}
  #allocation0 [shape = 'u32[]', space=smem, size = 0x4, offset = 0x4, fixed_abs, tag = 'smem constant byte address 0x4 - core index']
  #allocation1 [shape = 'u32[144,128]{1,0:T(1,128)}', space=vmem, size = 0x12000, scoped, tag = 'internal scratch']
  #allocation2 [shape = 'f32[8,128]{1,0:T(8,128)}', space=vmem, size = 0x1000, scoped, tag = 'scratch operand']
  %s0 = inlined_call_operand.hbm [shape: s32[8,6], index: 0, kind: input, shape index: {}]
  %s1 = inlined_call_operand.hbm [shape: f32[128,128], index: 1, kind: input, shape index: {}]
  %s2 = inlined_call_operand.hbm [shape: f32[8,128], index: 2, kind: output, shape index: {}]
  %s3 = sld [smem:[#allocation0]]
  $region26: #{tpu_custom_call.1} parent=0
    _
  %s5 = ssub.s32 1, %s3
  %s6 = scalar_select 0, %s5, %s3
  $region1: #{tpu_custom_call.1} parent=0
    #allocation3 [shape = 'u8[4096]{0}', space=vmem, size = 0x1000, scoped, tag = 'input window, operand 0, single buffered']
    #allocation4 [shape = 's32[1]{0}', space=sflag, size = 0x4, scoped, tag = 'scoped memory for tpu_custom_call.1']
    #allocation5 [shape = 's32[1]{0}', space=sflag, size = 0x4, scoped, tag = 'scoped memory for tpu_custom_call.1']
    #allocation6 [shape = 'u8[65536]{0}', space=vmem, size = 0x10000, scoped, tag = 'input window, operand 1, single buffered']
    #allocation7 [shape = 's32[1]{0}', space=sflag, size = 0x4, scoped, tag = 'scoped memory for tpu_custom_call.1']
    #allocation8 [shape = 'u8[4096]{0}', space=vmem, size = 0x1000, scoped, tag = 'output window, operand 0, single buffered']
    %7 = vsyncpa [#allocation4], 0
    %8 = vsyncpa [#allocation7], 0
    %9 = vsyncpa [#allocation5], 0
    // Predicated region
    $region2: #{tpu_custom_call.1} parent=1 // pred_check
      _
    $region3: #{tpu_custom_call.1} parent=1 // pred_check_branch
      %11 = sbr.rel (0) target = $region5
    $region4: #{tpu_custom_call.1} parent=1 // pred_region
      %s13 = ssub.s32 128, 128
      %14 = vsyncadd [#allocation4], %s13
      %s16 = sshll.u32 [#allocation3], 4
      %s17 = int_to_ptr.vmem [resolvable:$true] %s16
      %19 = dma.hbm_to_vmem [thread:$0]  %s0, 128, %s17, [#allocation4]
    $region5: #{tpu_custom_call.1} parent=1 // pred_fallthru
      _
    // Predicated region
    $region6: #{tpu_custom_call.1} parent=1 // pred_check
      _
    $region7: #{tpu_custom_call.1} parent=1 // pred_check_branch
      %21 = sbr.rel (0) target = $region9
    $region8: #{tpu_custom_call.1} parent=1 // pred_region
      %s23 = ssub.s32 2048, 2048
      %24 = vsyncadd [#allocation7], %s23
      %s25 = sshll.u32 [#allocation6], 4
      %s26 = int_to_ptr.vmem [resolvable:$true] %s25
      %31 = dma.hbm_to_vmem [thread:$0]  %s1, 2048, %s26, [#allocation7], 128, 128, 8
    $region9: #{tpu_custom_call.1} parent=1 // pred_fallthru
      _
    // Predicated region
    $region10: #{tpu_custom_call.1} parent=1 // pred_check
      _
    $region11: #{tpu_custom_call.1} parent=1 // pred_check_branch
      %33 = sbr.rel (0) target = $region13
    $region12: #{tpu_custom_call.1} parent=1 // pred_region
      %34 = dma.done [#allocation4], 128
    $region13: #{tpu_custom_call.1} parent=1 // pred_fallthru
      _
    // Predicated region
    $region14: #{tpu_custom_call.1} parent=1 // pred_check
      _
    $region15: #{tpu_custom_call.1} parent=1 // pred_check_branch
      %36 = sbr.rel (0) target = $region17
    $region16: #{tpu_custom_call.1} parent=1 // pred_region
      %37 = dma.done [#allocation7], 2048
    $region17: #{tpu_custom_call.1} parent=1 // pred_fallthru
      _
    %v38 = vld [vmem:[#allocation3] sm:$0xff]
    %v39 = vcvt.s32.f32 %v38
    %vm40 = vcmask 48128
    %41 = vst.msk [vmem:[#allocation2] sm:$0xff] %vm40, %v39
    %v42 = vlaneseq
    %v43 = vand.u32 %v42, 127
    %44 = vset.pattern.permute.xlu0 1
    %45 = vperm.xlu0 %44, %v38
    %v46 = vpop.permute.xlu0 %45
    %vm47 = vcmp.eq.s32.totalorder %v43, %v46
    %v48 = vsel %vm47, 1, 0
    %v49 = vcvt.s32.f32 %v48
    %51 = vrot.lane.b32.xlu0 %v49, 6
    %v52 = vpop.permute.xlu0 %51
    %vm54 = vcmask 89136
    %55 = vst.msk [vmem:[#allocation2] sm:$0xff] %vm54, %v52
    %56 = vset.pattern.permute.xlu0 4
    %57 = vperm.xlu0 %56, %v38
    %v58 = vpop.permute.xlu0 %57
    %vm59 = vcmp.eq.s32.totalorder %v43, %v58
    %v60 = vsel %vm59, 1, 0
    %v61 = vcvt.s32.f32 %v60
    %63 = vrot.lane.b32.xlu0 %v61, 11
    %v64 = vpop.permute.xlu0 %63
    %vm66 = vcmask 146520
    %67 = vst.msk [vmem:[#allocation2] sm:$0xff] %vm66, %v64
    %vm68 = vcmask 1047696
    %69 = vst.msk [vmem:[#allocation2] sm:$0xff] %vm68, 0.0
    %v70 = vld [vmem:[#allocation2] sm:$0xff]
    %v71 = vld [vmem:[#allocation6] sm:$0xff]
    %v72 = vld [vmem:[#allocation6 + $0x8] sm:$0xff]
    %v73 = vld [vmem:[#allocation6 + $0x10] sm:$0xff]
    %v74 = vld [vmem:[#allocation6 + $0x18] sm:$0xff]
    %v75 = vld [vmem:[#allocation6 + $0x20] sm:$0xff]
    %v76 = vld [vmem:[#allocation6 + $0x28] sm:$0xff]
    %v77 = vld [vmem:[#allocation6 + $0x30] sm:$0xff]
    %v78 = vld [vmem:[#allocation6 + $0x38] sm:$0xff]
    %v79 = vld [vmem:[#allocation6 + $0x40] sm:$0xff]
    %v80 = vld [vmem:[#allocation6 + $0x48] sm:$0xff]
    %v81 = vld [vmem:[#allocation6 + $0x50] sm:$0xff]
    %v82 = vld [vmem:[#allocation6 + $0x58] sm:$0xff]
    %v83 = vld [vmem:[#allocation6 + $0x60] sm:$0xff]
    %v84 = vld [vmem:[#allocation6 + $0x68] sm:$0xff]
    %v85 = vld [vmem:[#allocation6 + $0x70] sm:$0xff]
    %v86 = vld [vmem:[#allocation6 + $0x78] sm:$0xff]
    %87 = vmatprep.subr.mxu0 0.0
    %88 = vmatpush1.msra.mxu0 %v71
    %89 = vmatprep.subr.mxu0 0.0
    %90 = vmatpush1.msra.mxu0 %v72
    %91 = vmatprep.subr.mxu0 0.0
    %92 = vmatpush1.msra.mxu0 %v73
    %93 = vmatprep.subr.mxu0 0.0
    %94 = vmatpush1.msra.mxu0 %v74
    %95 = vmatprep.subr.mxu0 0.0
    %96 = vmatpush1.msra.mxu0 %v75
    %97 = vmatprep.subr.mxu0 0.0
    %98 = vmatpush1.msra.mxu0 %v76
    %99 = vmatprep.subr.mxu0 0.0
    %100 = vmatpush1.msra.mxu0 %v77
    %101 = vmatprep.subr.mxu0 0.0
    %102 = vmatpush1.msra.mxu0 %v78
    %103 = vmatprep.subr.mxu0 0.0
    %104 = vmatpush1.msra.mxu0 %v79
    %105 = vmatprep.subr.mxu0 0.0
    %106 = vmatpush1.msra.mxu0 %v80
    %107 = vmatprep.subr.mxu0 0.0
    %108 = vmatpush1.msra.mxu0 %v81
    %109 = vmatprep.subr.mxu0 0.0
    %110 = vmatpush1.msra.mxu0 %v82
    %111 = vmatprep.subr.mxu0 0.0
    %112 = vmatpush1.msra.mxu0 %v83
    %113 = vmatprep.subr.mxu0 0.0
    %114 = vmatpush1.msra.mxu0 %v84
    %115 = vmatprep.subr.mxu0 0.0
    %116 = vmatpush1.msra.mxu0 %v85
    %117 = vmatprep.subr.mxu0 0.0
    %118 = vmatpush1.msra.mxu0 %v86
    %119 = vmatprep.subr.mxu0 0.0
    %120 = vmatpush1.msra.mxu0 0.0
    %121 = vmatprep.subr.mxu0 0.0
    %122 = vmatpush1.msra.mxu0 0.0
    %123 = vmatprep.subr.mxu0 0.0
    %124 = vmatpush1.msra.mxu0 0.0
    %125 = vmatprep.subr.mxu0 0.0
    %126 = vmatpush1.msra.mxu0 0.0
    %127 = vmatprep.subr.mxu0 0.0
    %128 = vmatpush1.msra.mxu0 0.0
    %129 = vmatprep.subr.mxu0 0.0
    %130 = vmatpush1.msra.mxu0 0.0
    %131 = vmatprep.subr.mxu0 0.0
    %132 = vmatpush1.msra.mxu0 0.0
    %133 = vmatprep.subr.mxu0 0.0
    %134 = vmatpush1.msra.mxu0 0.0
    %135 = vmatprep.subr.mxu0 0.0
    %136 = vmatpush1.msra.mxu0 0.0
    %137 = vmatprep.subr.mxu0 0.0
    %138 = vmatpush1.msra.mxu0 0.0
    %139 = vmatprep.subr.mxu0 0.0
    %140 = vmatpush1.msra.mxu0 0.0
    %141 = vmatprep.subr.mxu0 0.0
    %142 = vmatpush1.msra.mxu0 0.0
    %143 = vmatprep.subr.mxu0 0.0
    %144 = vmatpush1.msra.mxu0 0.0
    %145 = vmatprep.subr.mxu0 0.0
    %146 = vmatpush1.msra.mxu0 0.0
    %147 = vmatprep.subr.mxu0 0.0
    %148 = vmatpush1.msra.mxu0 0.0
    %149 = vmatprep.subr.mxu0 0.0
    %150 = vmatpush1.msra.mxu0 0.0
    %151 = vmatprep.mubr.f32.mxu0 0.0
    %152 = vmatmul.mubr.f32.gmra.mrb[0].mxu0 %v70
    %v153 = vpop.f32.mrb[0].mxu0
    %v154 = vadd.f32 0.0, %v153
    %v155 = vpop.f32.mrb[0].mxu0
    %156 = vdwg.mxu0
    %157 = vst [vmem:[#allocation8] sm:$0xff] %v154
    // Predicated region
    $region18: #{tpu_custom_call.1} parent=1 // pred_check
      _
    $region19: #{tpu_custom_call.1} parent=1 // pred_check_branch
      %159 = sbr.rel (0) target = $region21
    $region20: #{tpu_custom_call.1} parent=1 // pred_region
      %s161 = ssub.s32 128, 128
      %162 = vsyncadd [#allocation5], %s161
      %s164 = sshll.u32 [#allocation8], 4
      %s165 = int_to_ptr.vmem [resolvable:$true] %s164
      %167 = dma.vmem_to_hbm [thread:$0]  %s165, 128, %s2, [#allocation5]
    $region21: #{tpu_custom_call.1} parent=1 // pred_fallthru
      _
    // Predicated region
    $region22: #{tpu_custom_call.1} parent=1 // pred_check
      _
    $region23: #{tpu_custom_call.1} parent=1 // pred_check_branch
      %169 = sbr.rel (0) target = $region25
    $region24: #{tpu_custom_call.1} parent=1 // pred_region
      %170 = dma.done [#allocation5], 128
    $region25: #{tpu_custom_call.1} parent=1 // pred_fallthru
      _
    %171 = vsyncpa [#allocation4], 1
    %172 = vsyncpa [#allocation7], 1
    %173 = vsyncpa [#allocation5], 1

// kernel: tpu_custom_call.1
$region0: #{tpu_custom_call.1}
  #allocation0 [shape = 'u32[]', space=smem, size = 0x4, offset = 0x4, fixed_abs, tag = 'smem constant byte address 0x4 - core index']
  #allocation1 [shape = 'u32[144,128]{1,0:T(1,128)}', space=vmem, size = 0x12000, scoped, tag = 'internal scratch']
  #allocation2 [shape = 'f32[8,128]{1,0:T(8,128)}', space=vmem, size = 0x1000, scoped, tag = 'scratch operand']
  %s0 = inlined_call_operand.hbm [shape: s32[8,6], index: 0, kind: input, shape index: {}]
  %s1 = inlined_call_operand.hbm [shape: f32[128,128], index: 1, kind: input, shape index: {}]
  %s2 = inlined_call_operand.hbm [shape: f32[8,128], index: 2, kind: output, shape index: {}]
  %s3 = sld [smem:[#allocation0]]
  $region26: #{tpu_custom_call.1} parent=0
    _
  %s5 = ssub.s32 1, %s3
  %s6 = scalar_select 0, %s5, %s3
  $region1: #{tpu_custom_call.1} parent=0
    #allocation3 [shape = 'u8[4096]{0}', space=vmem, size = 0x1000, scoped, tag = 'input window, operand 0, single buffered']
    #allocation4 [shape = 's32[1]{0}', space=sflag, size = 0x4, scoped, tag = 'scoped memory for tpu_custom_call.1']
    #allocation5 [shape = 's32[1]{0}', space=sflag, size = 0x4, scoped, tag = 'scoped memory for tpu_custom_call.1']
    #allocation6 [shape = 'u8[65536]{0}', space=vmem, size = 0x10000, scoped, tag = 'input window, operand 1, single buffered']
    #allocation7 [shape = 's32[1]{0}', space=sflag, size = 0x4, scoped, tag = 'scoped memory for tpu_custom_call.1']
    #allocation8 [shape = 'u8[4096]{0}', space=vmem, size = 0x1000, scoped, tag = 'output window, operand 0, single buffered']
    %7 = vsyncpa [#allocation4], 0
    %8 = vsyncpa [#allocation7], 0
    %9 = vsyncpa [#allocation5], 0
    // Predicated region
    $region2: #{tpu_custom_call.1} parent=1 // pred_check
      _
    $region3: #{tpu_custom_call.1} parent=1 // pred_check_branch
      %11 = sbr.rel (0) target = $region5
    $region4: #{tpu_custom_call.1} parent=1 // pred_region
      %s13 = ssub.s32 128, 128
      %14 = vsyncadd [#allocation4], %s13
      %s16 = sshll.u32 [#allocation3], 4
      %s17 = int_to_ptr.vmem [resolvable:$true] %s16
      %19 = dma.hbm_to_vmem [thread:$0]  %s0, 128, %s17, [#allocation4]
    $region5: #{tpu_custom_call.1} parent=1 // pred_fallthru
      _
    // Predicated region
    $region6: #{tpu_custom_call.1} parent=1 // pred_check
      _
    $region7: #{tpu_custom_call.1} parent=1 // pred_check_branch
      %21 = sbr.rel (0) target = $region9
    $region8: #{tpu_custom_call.1} parent=1 // pred_region
      %s23 = ssub.s32 2048, 2048
      %24 = vsyncadd [#allocation7], %s23
      %s25 = sshll.u32 [#allocation6], 4
      %s26 = int_to_ptr.vmem [resolvable:$true] %s25
      %31 = dma.hbm_to_vmem [thread:$0]  %s1, 2048, %s26, [#allocation7], 128, 128, 8
    $region9: #{tpu_custom_call.1} parent=1 // pred_fallthru
      _
    // Predicated region
    $region10: #{tpu_custom_call.1} parent=1 // pred_check
      _
    $region11: #{tpu_custom_call.1} parent=1 // pred_check_branch
      %33 = sbr.rel (0) target = $region13
    $region12: #{tpu_custom_call.1} parent=1 // pred_region
      %34 = dma.done [#allocation4], 128
    $region13: #{tpu_custom_call.1} parent=1 // pred_fallthru
      _
    // Predicated region
    $region14: #{tpu_custom_call.1} parent=1 // pred_check
      _
    $region15: #{tpu_custom_call.1} parent=1 // pred_check_branch
      %36 = sbr.rel (0) target = $region17
    $region16: #{tpu_custom_call.1} parent=1 // pred_region
      %37 = dma.done [#allocation7], 2048
    $region17: #{tpu_custom_call.1} parent=1 // pred_fallthru
      _
    %v38 = vld [vmem:[#allocation3] sm:$0xff]
    %v39 = vcvt.s32.f32 %v38
    %vm40 = vcmask 48128
    %41 = vst.msk [vmem:[#allocation2] sm:$0xff] %vm40, %v39
    %v42 = vlaneseq
    %v43 = vand.u32 %v42, 127
    %44 = vset.pattern.permute.xlu0 1
    %45 = vperm.xlu0 %44, %v38
    %v46 = vpop.permute.xlu0 %45
    %vm47 = vcmp.eq.s32.totalorder %v43, %v46
    %v48 = vsel %vm47, 1, 0
    %v49 = vcvt.s32.f32 %v48
    %51 = vrot.lane.b32.xlu0 %v49, 6
    %v52 = vpop.permute.xlu0 %51
    %vm54 = vcmask 89136
    %55 = vst.msk [vmem:[#allocation2] sm:$0xff] %vm54, %v52
    %56 = vset.pattern.permute.xlu0 4
    %57 = vperm.xlu0 %56, %v38
    %v58 = vpop.permute.xlu0 %57
    %vm59 = vcmp.eq.s32.totalorder %v43, %v58
    %v60 = vsel %vm59, 1, 0
    %v61 = vcvt.s32.f32 %v60
    %63 = vrot.lane.b32.xlu0 %v61, 11
    %v64 = vpop.permute.xlu0 %63
    %vm66 = vcmask 146520
    %67 = vst.msk [vmem:[#allocation2] sm:$0xff] %vm66, %v64
    %vm68 = vcmask 1047696
    %69 = vst.msk [vmem:[#allocation2] sm:$0xff] %vm68, 0.0
    %v70 = vld [vmem:[#allocation2] sm:$0xff]
    %v71 = vld [vmem:[#allocation6] sm:$0xff]
    %v72 = vld [vmem:[#allocation6 + $0x8] sm:$0xff]
    %v73 = vld [vmem:[#allocation6 + $0x10] sm:$0xff]
    %v74 = vld [vmem:[#allocation6 + $0x18] sm:$0xff]
    %v75 = vld [vmem:[#allocation6 + $0x20] sm:$0xff]
    %v76 = vld [vmem:[#allocation6 + $0x28] sm:$0xff]
    %v77 = vld [vmem:[#allocation6 + $0x30] sm:$0xff]
    %v78 = vld [vmem:[#allocation6 + $0x38] sm:$0xff]
    %v79 = vld [vmem:[#allocation6 + $0x40] sm:$0xff]
    %v80 = vld [vmem:[#allocation6 + $0x48] sm:$0xff]
    %v81 = vld [vmem:[#allocation6 + $0x50] sm:$0xff]
    %v82 = vld [vmem:[#allocation6 + $0x58] sm:$0xff]
    %v83 = vld [vmem:[#allocation6 + $0x60] sm:$0xff]
    %v84 = vld [vmem:[#allocation6 + $0x68] sm:$0xff]
    %v85 = vld [vmem:[#allocation6 + $0x70] sm:$0xff]
    %v86 = vld [vmem:[#allocation6 + $0x78] sm:$0xff]
    %87 = vmatprep.subr.mxu0 0.0
    %88 = vmatpush1.msra.mxu0 %v71
    %89 = vmatprep.subr.mxu0 0.0
    %90 = vmatpush1.msra.mxu0 %v72
    %91 = vmatprep.subr.mxu0 0.0
    %92 = vmatpush1.msra.mxu0 %v73
    %93 = vmatprep.subr.mxu0 0.0
    %94 = vmatpush1.msra.mxu0 %v74
    %95 = vmatprep.subr.mxu0 0.0
    %96 = vmatpush1.msra.mxu0 %v75
    %97 = vmatprep.subr.mxu0 0.0
    %98 = vmatpush1.msra.mxu0 %v76
    %99 = vmatprep.subr.mxu0 0.0
    %100 = vmatpush1.msra.mxu0 %v77
    %101 = vmatprep.subr.mxu0 0.0
    %102 = vmatpush1.msra.mxu0 %v78
    %103 = vmatprep.subr.mxu0 0.0
    %104 = vmatpush1.msra.mxu0 %v79
    %105 = vmatprep.subr.mxu0 0.0
    %106 = vmatpush1.msra.mxu0 %v80
    %107 = vmatprep.subr.mxu0 0.0
    %108 = vmatpush1.msra.mxu0 %v81
    %109 = vmatprep.subr.mxu0 0.0
    %110 = vmatpush1.msra.mxu0 %v82
    %111 = vmatprep.subr.mxu0 0.0
    %112 = vmatpush1.msra.mxu0 %v83
    %113 = vmatprep.subr.mxu0 0.0
    %114 = vmatpush1.msra.mxu0 %v84
    %115 = vmatprep.subr.mxu0 0.0
    %116 = vmatpush1.msra.mxu0 %v85
    %117 = vmatprep.subr.mxu0 0.0
    %118 = vmatpush1.msra.mxu0 %v86
    %119 = vmatprep.subr.mxu0 0.0
    %120 = vmatpush1.msra.mxu0 0.0
    %121 = vmatprep.subr.mxu0 0.0
    %122 = vmatpush1.msra.mxu0 0.0
    %123 = vmatprep.subr.mxu0 0.0
    %124 = vmatpush1.msra.mxu0 0.0
    %125 = vmatprep.subr.mxu0 0.0
    %126 = vmatpush1.msra.mxu0 0.0
    %127 = vmatprep.subr.mxu0 0.0
    %128 = vmatpush1.msra.mxu0 0.0
    %129 = vmatprep.subr.mxu0 0.0
    %130 = vmatpush1.msra.mxu0 0.0
    %131 = vmatprep.subr.mxu0 0.0
    %132 = vmatpush1.msra.mxu0 0.0
    %133 = vmatprep.subr.mxu0 0.0
    %134 = vmatpush1.msra.mxu0 0.0
    %135 = vmatprep.subr.mxu0 0.0
    %136 = vmatpush1.msra.mxu0 0.0
    %137 = vmatprep.subr.mxu0 0.0
    %138 = vmatpush1.msra.mxu0 0.0
    %139 = vmatprep.subr.mxu0 0.0
    %140 = vmatpush1.msra.mxu0 0.0
    %141 = vmatprep.subr.mxu0 0.0
    %142 = vmatpush1.msra.mxu0 0.0
    %143 = vmatprep.subr.mxu0 0.0
    %144 = vmatpush1.msra.mxu0 0.0
    %145 = vmatprep.subr.mxu0 0.0
    %146 = vmatpush1.msra.mxu0 0.0
    %147 = vmatprep.subr.mxu0 0.0
    %148 = vmatpush1.msra.mxu0 0.0
    %149 = vmatprep.subr.mxu0 0.0
    %150 = vmatpush1.msra.mxu0 0.0
    %151 = vmatprep.mubr.f32.mxu0 0.0
    %152 = vmatmul.mubr.f32.gmra.mrb[0].mxu0 %v70
    %v153 = vpop.f32.mrb[0].mxu0
    %v154 = vadd.f32 0.0, %v153
    %v155 = vpop.f32.mrb[0].mxu0
    %156 = vdwg.mxu0
    %157 = vst [vmem:[#allocation8] sm:$0xff] %v154
    // Predicated region
    $region18: #{tpu_custom_call.1} parent=1 // pred_check
      _
    $region19: #{tpu_custom_call.1} parent=1 // pred_check_branch
      %159 = sbr.rel (0) target = $region21
    $region20: #{tpu_custom_call.1} parent=1 // pred_region
      %s161 = ssub.s32 128, 128
      %162 = vsyncadd [#allocation5], %s161
      %s164 = sshll.u32 [#allocation8], 4
      %s165 = int_to_ptr.vmem [resolvable:$true] %s164
      %167 = dma.vmem_to_hbm [thread:$0]  %s165, 128, %s2, [#allocation5]
    $region21: #{tpu_custom_call.1} parent=1 // pred_fallthru
      _
    // Predicated region
    $region22: #{tpu_custom_call.1} parent=1 // pred_check
      _
    $region23: #{tpu_custom_call.1} parent=1 // pred_check_branch
      %169 = sbr.rel (0) target = $region25
    $region24: #{tpu_custom_call.1} parent=1 // pred_region
      %170 = dma.done [#allocation5], 128
    $region25: #{tpu_custom_call.1} parent=1 // pred_fallthru
      _
    %171 = vsyncpa [#allocation4], 1
    %172 = vsyncpa [#allocation7], 1
    %173 = vsyncpa [#allocation5], 1

</llo_original>
